<compile_context>
chip_gen: v7x
topology: tpu7x:2x2x1
jax: 0.10.0
libtpu: 0.0.40
codegen_flags: <defaults>
</compile_context>

<pallas_src>
import functools

import jax
import jax.numpy as jnp
import numpy as np
from jax import lax
from jax.experimental import pallas as pl
from jax.experimental.pallas import tpu as pltpu

LANE = 128
SUBLANE = 8


def _round_up(x, m):
    return (x + m - 1) // m * m


def _device_kind():
    try:
        return jax.devices()[0].device_kind.lower()
    except Exception:
        return ""


def _default_compute_dtype():
    """bf16 broadcast/tanh stage on v6e/v7x; f32 on older chips (no bf16 EUP)."""
    kind = _device_kind()
    if any(v in kind for v in ("v2", "v3", "v4", "v5")):
        return jnp.float32
    return jnp.bfloat16


def _vmem_limit_bytes():
    """Conservative scoped-VMEM limit: v7x only has 64 MiB per TensorCore."""
    kind = _device_kind()
    cap = 64 * 1024 * 1024 if "7" in kind else 128 * 1024 * 1024
    return int(min(cap // 2, 48 * 1024 * 1024))


def _mlp_scorer_kernel(q_ref, k_ref, w1q_ref, w1k_ref, b1_ref, w2_ref, b2_ref,
                       o_ref, hq_ref, *, compute_dtype, mxu_dtype, row_chunk,
                       unroll):
    sj = pl.program_id(2)

    # Layer-1 query projection depends only on (b, ti); compute once per inner
    # S-tile sweep and keep it in VMEM scratch, already in compute dtype.
    @pl.when(sj == 0)
    def _():
        hq_ref[...] = jnp.dot(
            q_ref[0].astype(mxu_dtype), w1q_ref[...],
            preferred_element_type=jnp.float32).astype(compute_dtype)

    # Layer-1 key projection with b1 folded in here ((ts,Hp) add, not (tt,ts,Hp)).
    hk = (jnp.dot(k_ref[0].astype(mxu_dtype), w1k_ref[...],
                  preferred_element_type=jnp.float32)
          + b1_ref[...]).astype(compute_dtype)                       # (ts, Hp)

    w2 = w2_ref[...]                                                 # (Hp, 1), mxu dtype
    b2 = b2_ref[0, 0]                                                # SMEM scalar
    ts, hp = hk.shape
    n_chunks = hq_ref.shape[0] // row_chunk                          # static

    # Chunk the broadcast stage over query rows so the (rows, ts, Hp)
    # intermediate never has to spill whole to VMEM; tanh (EUP) overlaps with
    # the layer-2 MXU contraction of the previous/next chunk.
    def chunk_body(c, carry):
        r0 = pl.multiple_of(c * row_chunk, row_chunk)
        hq_c = hq_ref[pl.ds(r0, row_chunk), :]                       # (rc, Hp)
        h = jnp.tanh(hq_c[:, None, :] + hk[None, :, :])              # (rc, ts, Hp)
        logits = jnp.dot(h.reshape(row_chunk * ts, hp).astype(mxu_dtype), w2,
                         preferred_element_type=jnp.float32)         # (rc*ts, 1)
        logits = logits.reshape(row_chunk, ts) + b2
        o_ref[0, pl.ds(r0, row_chunk), :] = jnp.tanh(logits).astype(o_ref.dtype)
        return carry

    lax.fori_loop(0, n_chunks, chunk_body, 0, unroll=unroll)


def _choose_tiles(B, T, S, Hp, itemsize, budget_bytes=4 * 1024 * 1024):
    """Pick (tt, ts, row_chunk): lane-dense output, bounded intermediate."""
    # Lane-dense output tiles (unmasked stores when possible).
    if S <= LANE:
        ts = S
    elif S % 256 == 0:
        ts = 256
    else:
        ts = LANE

    if T <= SUBLANE:
        tt = T
    else:
        max_tt = max(SUBLANE,
                     (budget_bytes // (ts * Hp * itemsize)) // SUBLANE * SUBLANE)
        tt = min(T // SUBLANE * SUBLANE, max_tt, 256)
        # Megacore balance (v7x has 2 TensorCores): make sure the parallel
        # (B, T-tile) axes expose at least 2 units of work.
        if B * pl.cdiv(T, tt) < 2:
            tt = max(SUBLANE, pl.cdiv(pl.cdiv(T, 2), SUBLANE) * SUBLANE)

    # Row-chunk for the in-kernel loop (always divides tt by construction).
    if tt <= 16:
        row_chunk = tt
    elif tt % 16 == 0:
        row_chunk = 16
    else:
        row_chunk = SUBLANE
    return tt, ts, row_chunk


def mlp_scorer(query, keys, params, *, compute_dtype=None,
               mxu_dtype=jnp.bfloat16):
    """query (B, T, M), keys (B, S, N) -> scores (B, T, S) in float32.

    compute_dtype: dtype of the broadcast add+tanh stage (None = auto: bf16 on
      v6e/v7x, f32 on <=v5).  mxu_dtype: dtype of the MXU operands (bf16 is
      fastest on every generation; pass jnp.float32 for bit-exact reference).
    """
    w1q, w1k, b1, w2, b2 = params
    B, T, M = query.shape
    _, S, N = keys.shape
    H = w1q.shape[1]

    if compute_dtype is None:
        compute_dtype = _default_compute_dtype()

    # Zero-pad the hidden dim to a lane multiple; padded columns give
    # tanh(0)*0 = 0 contributions, so numerics are unchanged.
    Hp = _round_up(H, LANE)
    if Hp != H:
        pad = ((0, 0), (0, Hp - H))
        w1q = jnp.pad(w1q, pad)
        w1k = jnp.pad(w1k, pad)
        b1 = jnp.pad(b1, pad)
        w2 = jnp.pad(w2, pad)
    # Pre-cast MXU weight operands once (also halves their DMA traffic).
    w1q = w1q.astype(mxu_dtype)
    w1k = w1k.astype(mxu_dtype)
    w2t = w2.T.astype(mxu_dtype)                 # (Hp, 1)
    b1 = b1.astype(jnp.float32)
    b2 = b2.astype(jnp.float32)

    itemsize = np.dtype(compute_dtype).itemsize
    tt, ts, row_chunk = _choose_tiles(B, T, S, Hp, itemsize)
    n_chunks = tt // row_chunk
    grid = (B, pl.cdiv(T, tt), pl.cdiv(S, ts))

    kernel = functools.partial(
        _mlp_scorer_kernel,
        compute_dtype=compute_dtype,
        mxu_dtype=mxu_dtype,
        row_chunk=row_chunk,
        unroll=(n_chunks <= 8),
    )

    return pl.pallas_call(
        kernel,
        out_shape=jax.ShapeDtypeStruct((B, T, S), jnp.float32),
        grid=grid,
        in_specs=[
            pl.BlockSpec((1, tt, M), lambda b, i, j: (b, i, 0)),
            pl.BlockSpec((1, ts, N), lambda b, i, j: (b, j, 0)),
            pl.BlockSpec((M, Hp), lambda b, i, j: (0, 0)),
            pl.BlockSpec((N, Hp), lambda b, i, j: (0, 0)),
            pl.BlockSpec((1, Hp), lambda b, i, j: (0, 0)),
            pl.BlockSpec((Hp, 1), lambda b, i, j: (0, 0)),
            pl.BlockSpec(memory_space=pltpu.MemorySpace.SMEM),   # b2 scalar
        ],
        out_specs=pl.BlockSpec((1, tt, ts), lambda b, i, j: (b, i, j)),
        scratch_shapes=[pltpu.VMEM((tt, Hp), compute_dtype)],
        compiler_params=pltpu.CompilerParams(
            # No reduction axis; B and T-tile axes shard across v7x's two
            # TensorCores.  S-tile axis stays "arbitrary" so the cached hq
            # scratch is valid across the inner sweep.
            dimension_semantics=("parallel", "parallel", "arbitrary"),
            vmem_limit_bytes=_vmem_limit_bytes(),
        ),
    )(query, keys, w1q, w1k, b1, w2t, b2)


def init_params(key, query_size, key_size):
    """Deterministic init mimicking nn.Linear shapes of MLPScorer (defaults)."""
    input_size = query_size + key_size
    hidden = input_size // 2          # default layer_sizes
    k1, k2, k3, k4 = jax.random.split(key, 4)
    bound1 = 1.0 / np.sqrt(input_size)
    bound2 = 1.0 / np.sqrt(hidden)
    # Layer 1: Linear(input_size, hidden); stored pre-transposed and pre-split
    # along the concat (input) axis.
    w1 = jax.random.uniform(k1, (input_size, hidden), jnp.float32, -bound1, bound1)
    b1 = jax.random.uniform(k2, (1, hidden), jnp.float32, -bound1, bound1)
    w1q = w1[:query_size]             # (M, H)
    w1k = w1[query_size:]             # (N, H)
    # Layer 2: Linear(hidden, 1).
    w2 = jax.random.uniform(k3, (1, hidden), jnp.float32, -bound2, bound2)
    b2 = jax.random.uniform(k4, (1, 1), jnp.float32, -bound2, bound2)
    return w1q, w1k, b1, w2, b2


def mlp_scorer_reference(query, keys, params):
    """Pure-JAX reference mirroring the PyTorch forward exactly (f32)."""
    w1q, w1k, b1, w2, b2 = params
    B, T, M = query.shape
    _, S, N = keys.shape
    xq = jnp.broadcast_to(query[:, :, None, :], (B, T, S, M))
    xk = jnp.broadcast_to(keys[:, None, :, :], (B, T, S, N))
    x = jnp.concatenate([xq, xk], axis=-1)                      # (B, T, S, M+N)
    w1 = jnp.concatenate([w1q, w1k], axis=0)                    # (M+N, H)
    x = jnp.tanh(x @ w1 + b1[0])                                # (B, T, S, H)
    x = jnp.tanh(x @ w2.T + b2[0])                              # (B, T, S, 1)
    return x[..., 0]                                            # (B, T, S)


def _check(query, keys, params):
    ref = np.asarray(mlp_scorer_reference(query, keys, params))

    # Exact path (f32 everywhere): tight tolerance, validates structure.
    out_exact = jax.block_until_ready(
        mlp_scorer(query, keys, params,
                   compute_dtype=jnp.float32, mxu_dtype=jnp.float32))
    np.testing.assert_allclose(np.asarray(out_exact), ref, rtol=1e-5, atol=1e-5)

    # Default (performance) path: bf16 MXU operands, bf16 elementwise stage on
    # v6e/v7x; loose tolerance accounts for bf16 rounding before each tanh.
    out_fast = jax.block_until_ready(mlp_scorer(query, keys, params))
    np.testing.assert_allclose(np.asarray(out_fast), ref, rtol=6e-2, atol=6e-2)


if __name__ == "__main__":
    root = jax.random.PRNGKey(0)

    # Small config consistent with the module defaults.
    B, T, S = 2, 8, 8
    QUERY_SIZE, KEY_SIZE = 32, 32
    kq, kk, kp = jax.random.split(root, 3)
    query = jax.random.normal(kq, (B, T, QUERY_SIZE), jnp.float32)
    keys = jax.random.normal(kk, (B, S, KEY_SIZE), jnp.float32)
    params = init_params(kp, QUERY_SIZE, KEY_SIZE)
    _check(query, keys, params)

    # Second config: asymmetric query/key sizes, multiple T/S tiles, exercises
    # the chunked inner loop, hq scratch caching, megacore T-split, and
    # lane-dense (256-wide) output stores.
    B2, T2, S2 = 1, 24, 256
    Q2, K2 = 48, 16
    kq2, kk2, kp2 = jax.random.split(jax.random.PRNGKey(1), 3)
    query2 = jax.random.normal(kq2, (B2, T2, Q2), jnp.float32)
    keys2 = jax.random.normal(kk2, (B2, S2, K2), jnp.float32)
    params2 = init_params(kp2, Q2, K2)
    _check(query2, keys2, params2)

    print("KERNEL_OK")
</pallas_src>

<mosaic_0001>
module attributes {stable_mosaic.version = 11 : i64} {
  func.func @_mlp_scorer_kernel(%arg0: i32, %arg1: i32, %arg2: i32, %arg3: memref<1x8x32xf32, #tpu.memory_space<vmem>>, %arg4: memref<1x8x32xf32, #tpu.memory_space<vmem>>, %arg5: memref<32x128xf32, #tpu.memory_space<vmem>>, %arg6: memref<32x128xf32, #tpu.memory_space<vmem>>, %arg7: memref<1x128xf32, #tpu.memory_space<vmem>>, %arg8: memref<128x1xf32, #tpu.memory_space<vmem>>, %arg9: memref<1x1xf32, #tpu.memory_space<smem>>, %arg10: memref<1x8x8xf32, #tpu.memory_space<vmem>>, %arg11: memref<8x128xf32, #tpu.memory_space<vmem>>) attributes {dimension_semantics = [#tpu.dimension_semantics<parallel>, #tpu.dimension_semantics<parallel>, #tpu.dimension_semantics<arbitrary>], iteration_bounds = array<i64: 2, 1, 1>, scalar_prefetch = 0 : i64, scratch_operands = 1 : i64, tpu.core_type = #tpu.core_type<tc>, window_params = [{transform_indices = @transform_0, window_bounds = array<i64: 1, 8, 32>}, {transform_indices = @transform_1, window_bounds = array<i64: 1, 8, 32>}, {pipeline_mode = #tpu.pipeline_mode<synchronous>, transform_indices = @transform_2, window_bounds = array<i64: 32, 128>}, {pipeline_mode = #tpu.pipeline_mode<synchronous>, transform_indices = @transform_3, window_bounds = array<i64: 32, 128>}, {pipeline_mode = #tpu.pipeline_mode<synchronous>, transform_indices = @transform_4, window_bounds = array<i64: 1, 128>}, {pipeline_mode = #tpu.pipeline_mode<synchronous>, transform_indices = @transform_5, window_bounds = array<i64: 128, 1>}, {transform_indices = @transform_6, window_bounds = array<i64: 1, 1>}, {transform_indices = @transform_7, window_bounds = array<i64: 1, 8, 8>}]} {
    %c0_i32 = arith.constant 0 : i32
    %0 = arith.cmpi eq, %arg2, %c0_i32 : i32
    %1 = arith.extui %0 : i1 to i32
    %c0_i32_0 = arith.constant 0 : i32
    %2 = arith.cmpi ne, %1, %c0_i32_0 : i32
    scf.if %2 {
      %c0_16 = arith.constant 0 : index
      %c0_17 = arith.constant 0 : index
      %c0_18 = arith.constant 0 : index
      %32 = vector.load %arg3[%c0_16, %c0_17, %c0_18] : memref<1x8x32xf32, #tpu.memory_space<vmem>>, vector<1x8x32xf32>
      %33 = vector.shape_cast %32 : vector<1x8x32xf32> to vector<8x32xf32>
      %c0_19 = arith.constant 0 : index
      %c0_20 = arith.constant 0 : index
      %34 = vector.load %arg5[%c0_19, %c0_20] : memref<32x128xf32, #tpu.memory_space<vmem>>, vector<32x128xf32>
      %cst_21 = arith.constant dense<0.000000e+00> : vector<8x128xf32>
      %35 = tpu.matmul %33, %34, %cst_21 {dimension_numbers = #tpu.dot_dimension_numbers<[1], [0], [0], [1], [0, 0, 1, 1], [], []>} : vector<8x32xf32>, vector<32x128xf32>, vector<8x128xf32> -> vector<8x128xf32>
      %c0_22 = arith.constant 0 : index
      %c0_23 = arith.constant 0 : index
      %36 = vector.load %arg11[%c0_22, %c0_23] : memref<8x128xf32, #tpu.memory_space<vmem>>, vector<8x128xf32>
      tpu.vector_store %arg11[%c0_22, %c0_23], %35 {strides = array<i32>} : memref<8x128xf32, #tpu.memory_space<vmem>>, vector<8x128xf32>,
    } else {
    }
    %c0 = arith.constant 0 : index
    %c0_1 = arith.constant 0 : index
    %c0_2 = arith.constant 0 : index
    %3 = vector.load %arg4[%c0, %c0_1, %c0_2] : memref<1x8x32xf32, #tpu.memory_space<vmem>>, vector<1x8x32xf32>
    %4 = vector.shape_cast %3 : vector<1x8x32xf32> to vector<8x32xf32>
    %c0_3 = arith.constant 0 : index
    %c0_4 = arith.constant 0 : index
    %5 = vector.load %arg6[%c0_3, %c0_4] : memref<32x128xf32, #tpu.memory_space<vmem>>, vector<32x128xf32>
    %cst = arith.constant dense<0.000000e+00> : vector<8x128xf32>
    %6 = tpu.matmul %4, %5, %cst {dimension_numbers = #tpu.dot_dimension_numbers<[1], [0], [0], [1], [0, 0, 1, 1], [], []>} : vector<8x32xf32>, vector<32x128xf32>, vector<8x128xf32> -> vector<8x128xf32>
    %c0_5 = arith.constant 0 : index
    %c0_6 = arith.constant 0 : index
    %7 = vector.load %arg7[%c0_5, %c0_6] : memref<1x128xf32, #tpu.memory_space<vmem>>, vector<1x128xf32>
    %8 = vector.broadcast %7 : vector<1x128xf32> to vector<8x128xf32>
    %9 = arith.addf %6, %8 : vector<8x128xf32>
    %c0_7 = arith.constant 0 : index
    %c0_8 = arith.constant 0 : index
    %10 = vector.load %arg8[%c0_7, %c0_8] : memref<128x1xf32, #tpu.memory_space<vmem>>, vector<128x1xf32>
    %c0_9 = arith.constant 0 : index
    %c0_10 = arith.constant 0 : index
    %11 = memref.load %arg9[%c0_9, %c0_10] : memref<1x1xf32, #tpu.memory_space<smem>>
    %c0_i32_11 = arith.constant 0 : i32
    %c8_i32 = arith.constant 8 : i32
    %12 = arith.muli %c0_i32_11, %c8_i32 : i32
    %13 = tpu.assume_multiple %12, 8 : i32
    %14 = arith.index_cast %13 : i32 to index
    %c0_12 = arith.constant 0 : index
    %15 = vector.load %arg11[%14, %c0_12] : memref<8x128xf32, #tpu.memory_space<vmem>>, vector<8x128xf32>
    %16 = vector.shape_cast %15 : vector<8x128xf32> to vector<8x1x128xf32>
    %17 = vector.shape_cast %9 : vector<8x128xf32> to vector<1x8x128xf32>
    %18 = vector.broadcast %16 : vector<8x1x128xf32> to vector<8x8x128xf32>
    %19 = vector.broadcast %17 : vector<1x8x128xf32> to vector<8x8x128xf32>
    %20 = arith.addf %18, %19 : vector<8x8x128xf32>
    %21 = math.tanh %20 : vector<8x8x128xf32>
    %22 = vector.shape_cast %21 : vector<8x8x128xf32> to vector<64x128xf32>
    %cst_13 = arith.constant dense<0.000000e+00> : vector<64x1xf32>
    %23 = tpu.matmul %22, %10, %cst_13 {dimension_numbers = #tpu.dot_dimension_numbers<[1], [0], [0], [1], [0, 0, 1, 1], [], []>} : vector<64x128xf32>, vector<128x1xf32>, vector<64x1xf32> -> vector<64x1xf32>
    %24 = vector.shape_cast %23 : vector<64x1xf32> to vector<8x8xf32>
    %25 = vector.broadcast %11 : f32 to vector<8x8xf32>
    %26 = arith.addf %24, %25 : vector<8x8xf32>
    %27 = math.tanh %26 : vector<8x8xf32>
    %c0_14 = arith.constant 0 : index
    %28 = arith.index_cast %13 : i32 to index
    %c0_15 = arith.constant 0 : index
    %29 = vector.load %arg10[%c0_14, %28, %c0_15] : memref<1x8x8xf32, #tpu.memory_space<vmem>>, vector<1x8x8xf32>
    %30 = vector.shape_cast %29 : vector<1x8x8xf32> to vector<8x8xf32>
    %31 = vector.shape_cast %27 : vector<8x8xf32> to vector<1x8x8xf32>
    tpu.vector_store %arg10[%c0_14, %28, %c0_15], %31 {strides = array<i32>} : memref<1x8x8xf32, #tpu.memory_space<vmem>>, vector<1x8x8xf32>,
    %c1_i32 = arith.constant 1 : i32
    return
  }
  func.func @transform_0(%arg0: i32, %arg1: i32, %arg2: i32) -> (i32, i32, i32) {
    %c0_i32 = arith.constant 0 : i32
    %c0_i32_0 = arith.constant 0 : i32
    return %arg0, %arg1, %c0_i32 : i32, i32, i32
  }
  func.func @transform_1(%arg0: i32, %arg1: i32, %arg2: i32) -> (i32, i32, i32) {
    %c0_i32 = arith.constant 0 : i32
    %c0_i32_0 = arith.constant 0 : i32
    return %arg0, %arg2, %c0_i32 : i32, i32, i32
  }
  func.func @transform_2(%arg0: i32, %arg1: i32, %arg2: i32) -> (i32, i32) {
    %c0_i32 = arith.constant 0 : i32
    %c0_i32_0 = arith.constant 0 : i32
    %c0_i32_1 = arith.constant 0 : i32
    return %c0_i32, %c0_i32_0 : i32, i32
  }
  func.func @transform_3(%arg0: i32, %arg1: i32, %arg2: i32) -> (i32, i32) {
    %c0_i32 = arith.constant 0 : i32
    %c0_i32_0 = arith.constant 0 : i32
    %c0_i32_1 = arith.constant 0 : i32
    return %c0_i32, %c0_i32_0 : i32, i32
  }
  func.func @transform_4(%arg0: i32, %arg1: i32, %arg2: i32) -> (i32, i32) {
    %c0_i32 = arith.constant 0 : i32
    %c0_i32_0 = arith.constant 0 : i32
    %c0_i32_1 = arith.constant 0 : i32
    return %c0_i32, %c0_i32_0 : i32, i32
  }
  func.func @transform_5(%arg0: i32, %arg1: i32, %arg2: i32) -> (i32, i32) {
    %c0_i32 = arith.constant 0 : i32
    %c0_i32_0 = arith.constant 0 : i32
    %c0_i32_1 = arith.constant 0 : i32
    return %c0_i32, %c0_i32_0 : i32, i32
  }
  func.func @transform_6(%arg0: i32, %arg1: i32, %arg2: i32) -> (i32, i32) {
    %c0_i32 = arith.constant 0 : i32
    %c0_i32_0 = arith.constant 0 : i32
    %c0_i32_1 = arith.constant 0 : i32
    return %c0_i32, %c0_i32_0 : i32, i32
  }
  func.func @transform_7(%arg0: i32, %arg1: i32, %arg2: i32) -> (i32, i32, i32) {
    %c0_i32 = arith.constant 0 : i32
    return %arg0, %arg1, %arg2 : i32, i32, i32
  }
}

</mosaic_0001>

<llo_original>
// kernel: tpu_custom_call.1
$region0: #{tpu_custom_call.1}
  #allocation0 [shape = 'u32[]', space=smem, size = 0x4, offset = 0x4, fixed_abs, tag = 'smem constant byte address 0x4 - core index']
  #allocation1 [shape = 'u32[144,128]{1,0:T(1,128)}', space=vmem, size = 0x12000, scoped, tag = 'internal scratch']
  #allocation2 [shape = 'f32[8,128]{1,0:T(8,128)}', space=vmem, size = 0x1000, scoped, tag = 'scratch operand']
  #allocation3 [shape = 'f32[1,1]{1,0:T(1,128)S(6)}', space=smem, size = 0x200, scoped, tag = 'scoped memory for tpu_custom_call.1']
  %s0 = inlined_call_operand.vmem [shape: f32[2,8,32], index: 0, kind: input, shape index: {}]
  %s1 = inlined_call_operand.vmem [shape: f32[2,8,32], index: 1, kind: input, shape index: {}]
  %s2 = inlined_call_operand.vmem [shape: f32[32,128], index: 2, kind: input, shape index: {}]
  %s3 = inlined_call_operand.vmem [shape: f32[32,128], index: 3, kind: input, shape index: {}]
  %s4 = inlined_call_operand.vmem [shape: f32[1,128], index: 4, kind: input, shape index: {}]
  %s5 = inlined_call_operand.vmem [shape: f32[128,1], index: 5, kind: input, shape index: {}]
  %s6 = inlined_call_operand.<no memory space> [shape: f32[1,1], index: 6, kind: input, shape index: {}]
  %s7 = inlined_call_operand.hbm [shape: f32[2,8,8], index: 7, kind: output, shape index: {}]
  %s8 = sld [smem:[#allocation0]]
  $region65: #{tpu_custom_call.1} parent=0
    _
  %s10 = ssub.s32 1, %s8
  %s11 = scalar_select 0, %s10, %s8
  %12 = sst [smem:[#allocation3]] %s6
  $region1: #{tpu_custom_call.1} parent=0
    #allocation4 [shape = 'u8[8192]{0}', space=vmem, size = 0x2000, scoped, tag = 'output window, operand 0']
    #allocation5 [shape = 's32[2]{0}', space=sflag, size = 0x8, scoped, tag = 'scoped memory for tpu_custom_call.1']
    %13 = vsyncpa [#allocation5], 0
    %s14 = scalar_lea.sflag [#allocation5], 1
    %15 = vsyncpa %s14, 0
    loop: start=0, step=1, limit=4
    $region2: #{tpu_custom_call.1} parent=1 // loop_pre_header
      _
    $region3: #{tpu_custom_call.1} parent=1 // loop_header
      %s17 = sphi 0, %s21
      %p18 = scmp.ge.s32.totalorder %s17, 4
      %s24 = sphi 0, %s43
      %s25 = sphi 0, %s39
      %s26 = sphi 0, %s35
      %s27 = sphi 0, %s24
      %s28 = sphi 0, %s25
      %s29 = sphi 0, %s26
      %s30 = sphi 0, %s27
      %s31 = sphi 0, %s28
      %s32 = sphi 0, %s29
      %s48 = sphi 0, %s50
      %s51 = sphi 0, %s48
      %s52 = sphi 0, %s51
      %s68 = sphi 0, %s52
      %s76 = sphi 0, %s78
      %s79 = sphi 0, %s76
      %s80 = sphi 0, %s79
      %s96 = sphi 0, %s80
      %s100 = sphi 0, %s100
      %s102 = sphi 0, %s100
      %s103 = sphi 0, %s102
      %s117 = sphi 0, %s103
      %s121 = sphi 0, %s121
      %s123 = sphi 0, %s121
      %s124 = sphi 0, %s123
      %s138 = sphi 0, %s124
      %s142 = sphi 0, %s142
      %s144 = sphi 0, %s142
      %s145 = sphi 0, %s144
      %s159 = sphi 0, %s145
      %s163 = sphi 0, %s163
      %s165 = sphi 0, %s163
      %s166 = sphi 0, %s165
      %s180 = sphi 0, %s166
      %s184 = sphi 0, %s184
      %s186 = sphi 0, %s184
      %s187 = sphi 0, %s186
      %s201 = sphi 0, %s187
      %s211 = sphi 0, %s213
      %s214 = sphi 0, %s211
      %s215 = sphi 0, %s214
      %s231 = sphi 0, %s215
    $region4: #{tpu_custom_call.1} parent=1 // loop_header_branch
      %20 = sbr.rel (%p18) target = $region8
    $region5: #{tpu_custom_call.1} parent=1 // loop_body
      %s22 = ssub.s32 %s17, 1
      %s23 = ssub.s32 %s17, 2
      %s33 = sadd.s32 1, %s26
      %p34 = scmp.ge.s32.totalorder %s33, 1
      %s35 = scalar_select %p34, 0, %s33
      %s36 = sadd.s32 1, %s25
      %s37 = scalar_select %p34, %s36, %s25
      %p38 = scmp.ge.s32.totalorder %s37, 1
      %s39 = scalar_select %p38, 0, %s37
      %s40 = sadd.s32 1, %s24
      %s41 = scalar_select %p38, %s40, %s24
      %p42 = scmp.ge.s32.totalorder %s41, 2
      %s43 = scalar_select %p42, 0, %s41
      %s44 = ssub.s32 %s24, %s43
      %s45 = ssub.s32 %s25, %s39
      %s46 = sor.u32 %s44, %s45
      %p47 = scmp.eq.s32.totalorder %s46, 0
      %s49 = sadd.s32 %s48, 1
      %s50 = scalar_select %p47, %s48, %s49
      %p53 = pneg %p47
      %p54 = scmp.eq.s32.totalorder %s17, 1
      %p55 = por %p53, %p54
      %p56 = scmp.ne.s32.totalorder %s48, %s51
      %p57 = scmp.eq.s32.totalorder %s17, 0
      %p58 = por %p56, %p57
      %p59 = scmp.ne.s32.totalorder %s48, %s51
      %p60 = scmp.eq.s32.totalorder %s22, 1
      %p61 = por %p59, %p60
      %p62 = scmp.ne.s32.totalorder %s51, %s52
      %p63 = scmp.eq.s32.totalorder %s22, 0
      %p64 = por %p62, %p63
      %p65 = scmp.ne.s32.totalorder %s51, %s52
      %p66 = scmp.eq.s32.totalorder %s23, 1
      %p67 = por %p65, %p66
      %p69 = scmp.ne.s32.totalorder %s52, %s68
      %p70 = scmp.eq.s32.totalorder %s23, 0
      %p71 = por %p69, %p70
      %s72 = ssub.s32 %s24, %s43
      %s73 = ssub.s32 %s26, %s35
      %s74 = sor.u32 %s72, %s73
      %p75 = scmp.eq.s32.totalorder %s74, 0
      %s77 = sadd.s32 %s76, 1
      %s78 = scalar_select %p75, %s76, %s77
      %p81 = pneg %p75
      %p82 = scmp.eq.s32.totalorder %s17, 1
      %p83 = por %p81, %p82
      %p84 = scmp.ne.s32.totalorder %s76, %s79
      %p85 = scmp.eq.s32.totalorder %s17, 0
      %p86 = por %p84, %p85
      %p87 = scmp.ne.s32.totalorder %s76, %s79
      %p88 = scmp.eq.s32.totalorder %s22, 1
      %p89 = por %p87, %p88
      %p90 = scmp.ne.s32.totalorder %s79, %s80
      %p91 = scmp.eq.s32.totalorder %s22, 0
      %p92 = por %p90, %p91
      %p93 = scmp.ne.s32.totalorder %s79, %s80
      %p94 = scmp.eq.s32.totalorder %s23, 1
      %p95 = por %p93, %p94
      %p97 = scmp.ne.s32.totalorder %s80, %s96
      %p98 = scmp.eq.s32.totalorder %s23, 0
      %p99 = por %p97, %p98
      %s101 = sadd.s32 %s100, 1
      %p104 = scmp.eq.s32.totalorder %s17, 1
      %p105 = scmp.ne.s32.totalorder %s100, %s102
      %p106 = scmp.eq.s32.totalorder %s17, 0
      %p107 = por %p105, %p106
      %p108 = scmp.ne.s32.totalorder %s100, %s102
      %p109 = scmp.eq.s32.totalorder %s22, 1
      %p110 = por %p108, %p109
      %p111 = scmp.ne.s32.totalorder %s102, %s103
      %p112 = scmp.eq.s32.totalorder %s22, 0
      %p113 = por %p111, %p112
      %p114 = scmp.ne.s32.totalorder %s102, %s103
      %p115 = scmp.eq.s32.totalorder %s23, 1
      %p116 = por %p114, %p115
      %p118 = scmp.ne.s32.totalorder %s103, %s117
      %p119 = scmp.eq.s32.totalorder %s23, 0
      %p120 = por %p118, %p119
      %s122 = sadd.s32 %s121, 1
      %p125 = scmp.eq.s32.totalorder %s17, 1
      %p126 = scmp.ne.s32.totalorder %s121, %s123
      %p127 = scmp.eq.s32.totalorder %s17, 0
      %p128 = por %p126, %p127
      %p129 = scmp.ne.s32.totalorder %s121, %s123
      %p130 = scmp.eq.s32.totalorder %s22, 1
      %p131 = por %p129, %p130
      %p132 = scmp.ne.s32.totalorder %s123, %s124
      %p133 = scmp.eq.s32.totalorder %s22, 0
      %p134 = por %p132, %p133
      %p135 = scmp.ne.s32.totalorder %s123, %s124
      %p136 = scmp.eq.s32.totalorder %s23, 1
      %p137 = por %p135, %p136
      %p139 = scmp.ne.s32.totalorder %s124, %s138
      %p140 = scmp.eq.s32.totalorder %s23, 0
      %p141 = por %p139, %p140
      %s143 = sadd.s32 %s142, 1
      %p146 = scmp.eq.s32.totalorder %s17, 1
      %p147 = scmp.ne.s32.totalorder %s142, %s144
      %p148 = scmp.eq.s32.totalorder %s17, 0
      %p149 = por %p147, %p148
      %p150 = scmp.ne.s32.totalorder %s142, %s144
      %p151 = scmp.eq.s32.totalorder %s22, 1
      %p152 = por %p150, %p151
      %p153 = scmp.ne.s32.totalorder %s144, %s145
      %p154 = scmp.eq.s32.totalorder %s22, 0
      %p155 = por %p153, %p154
      %p156 = scmp.ne.s32.totalorder %s144, %s145
      %p157 = scmp.eq.s32.totalorder %s23, 1
      %p158 = por %p156, %p157
      %p160 = scmp.ne.s32.totalorder %s145, %s159
      %p161 = scmp.eq.s32.totalorder %s23, 0
      %p162 = por %p160, %p161
      %s164 = sadd.s32 %s163, 1
      %p167 = scmp.eq.s32.totalorder %s17, 1
      %p168 = scmp.ne.s32.totalorder %s163, %s165
      %p169 = scmp.eq.s32.totalorder %s17, 0
      %p170 = por %p168, %p169
      %p171 = scmp.ne.s32.totalorder %s163, %s165
      %p172 = scmp.eq.s32.totalorder %s22, 1
      %p173 = por %p171, %p172
      %p174 = scmp.ne.s32.totalorder %s165, %s166
      %p175 = scmp.eq.s32.totalorder %s22, 0
      %p176 = por %p174, %p175
      %p177 = scmp.ne.s32.totalorder %s165, %s166
      %p178 = scmp.eq.s32.totalorder %s23, 1
      %p179 = por %p177, %p178
      %p181 = scmp.ne.s32.totalorder %s166, %s180
      %p182 = scmp.eq.s32.totalorder %s23, 0
      %p183 = por %p181, %p182
      %s185 = sadd.s32 %s184, 1
      %p188 = scmp.eq.s32.totalorder %s17, 1
      %p189 = scmp.ne.s32.totalorder %s184, %s186
      %p190 = scmp.eq.s32.totalorder %s17, 0
      %p191 = por %p189, %p190
      %p192 = scmp.ne.s32.totalorder %s184, %s186
      %p193 = scmp.eq.s32.totalorder %s22, 1
      %p194 = por %p192, %p193
      %p195 = scmp.ne.s32.totalorder %s186, %s187
      %p196 = scmp.eq.s32.totalorder %s22, 0
      %p197 = por %p195, %p196
      %p198 = scmp.ne.s32.totalorder %s186, %s187
      %p199 = scmp.eq.s32.totalorder %s23, 1
      %p200 = por %p198, %p199
      %p202 = scmp.ne.s32.totalorder %s187, %s201
      %p203 = scmp.eq.s32.totalorder %s23, 0
      %p204 = por %p202, %p203
      %s205 = ssub.s32 %s24, %s43
      %s206 = ssub.s32 %s25, %s39
      %s207 = sor.u32 %s205, %s206
      %s208 = ssub.s32 %s26, %s35
      %s209 = sor.u32 %s207, %s208
      %p210 = scmp.eq.s32.totalorder %s209, 0
      %s212 = sadd.s32 %s211, 1
      %s213 = scalar_select %p210, %s211, %s212
      %p216 = pneg %p210
      %p217 = scmp.eq.s32.totalorder %s17, 1
      %p218 = por %p216, %p217
      %p219 = scmp.ne.s32.totalorder %s211, %s214
      %p220 = scmp.eq.s32.totalorder %s17, 0
      %p221 = por %p219, %p220
      %p222 = scmp.ne.s32.totalorder %s211, %s214
      %p223 = scmp.eq.s32.totalorder %s22, 1
      %p224 = por %p222, %p223
      %p225 = scmp.ne.s32.totalorder %s214, %s215
      %p226 = scmp.eq.s32.totalorder %s22, 0
      %p227 = por %p225, %p226
      %p228 = scmp.ne.s32.totalorder %s214, %s215
      %p229 = scmp.eq.s32.totalorder %s23, 1
      %p230 = por %p228, %p229
      %p232 = scmp.ne.s32.totalorder %s215, %s231
      %p233 = scmp.eq.s32.totalorder %s23, 0
      %p234 = por %p232, %p233
      %p235 = scmp.le.s32.totalorder 1, %s17
      %p236 = scmp.lt.s32.totalorder %s17, 3
      %p237 = pnand %p235, %p236
      %p238 = pneg %p237
      // Predicated region
      $region9: #{tpu_custom_call.1} parent=5 // pred_check
        _
      $region10: #{tpu_custom_call.1} parent=5 // pred_check_branch
        %240 = sbr.rel (%p237) target = $region12
      $region11: #{tpu_custom_call.1} parent=5 // pred_region
        %s241 = ssub.s32 %s17, 1
        // Predicated region
        $region13: #{tpu_custom_call.1} parent=11 // pred_check
          %p242 = pneg %p113
        $region14: #{tpu_custom_call.1} parent=11 // pred_check_branch
          %244 = sbr.rel (%p242) target = $region16
        $region15: #{tpu_custom_call.1} parent=11 // pred_region
          _
        $region16: #{tpu_custom_call.1} parent=11 // pred_fallthru
          _
        // Predicated region
        $region17: #{tpu_custom_call.1} parent=11 // pred_check
          %p245 = pneg %p134
        $region18: #{tpu_custom_call.1} parent=11 // pred_check_branch
          %247 = sbr.rel (%p245) target = $region20
        $region19: #{tpu_custom_call.1} parent=11 // pred_region
          _
        $region20: #{tpu_custom_call.1} parent=11 // pred_fallthru
          _
        // Predicated region
        $region21: #{tpu_custom_call.1} parent=11 // pred_check
          %p248 = pneg %p155
        $region22: #{tpu_custom_call.1} parent=11 // pred_check_branch
          %250 = sbr.rel (%p248) target = $region24
        $region23: #{tpu_custom_call.1} parent=11 // pred_region
          _
        $region24: #{tpu_custom_call.1} parent=11 // pred_fallthru
          _
        // Predicated region
        $region25: #{tpu_custom_call.1} parent=11 // pred_check
          %p251 = pneg %p176
        $region26: #{tpu_custom_call.1} parent=11 // pred_check_branch
          %253 = sbr.rel (%p251) target = $region28
        $region27: #{tpu_custom_call.1} parent=11 // pred_region
          _
        $region28: #{tpu_custom_call.1} parent=11 // pred_fallthru
          _
        // Predicated region
        $region29: #{tpu_custom_call.1} parent=11 // pred_check
          %p254 = pneg %p197
        $region30: #{tpu_custom_call.1} parent=11 // pred_check_branch
          %256 = sbr.rel (%p254) target = $region32
        $region31: #{tpu_custom_call.1} parent=11 // pred_region
          _
        $region32: #{tpu_custom_call.1} parent=11 // pred_fallthru
          _
      $region12: #{tpu_custom_call.1} parent=5 // pred_fallthru
        _
      %p257 = scmp.lt.s32.totalorder %s17, 2
      // Predicated region
      $region33: #{tpu_custom_call.1} parent=5 // pred_check
        %p258 = pneg %p257
      $region34: #{tpu_custom_call.1} parent=5 // pred_check_branch
        %260 = sbr.rel (%p258) target = $region36
      $region35: #{tpu_custom_call.1} parent=5 // pred_region
        // Predicated region
        $region37: #{tpu_custom_call.1} parent=35 // pred_check
          %p261 = pneg %p58
        $region38: #{tpu_custom_call.1} parent=35 // pred_check_branch
          %263 = sbr.rel (%p261) target = $region40
        $region39: #{tpu_custom_call.1} parent=35 // pred_region
          %p264 = scmp.lt.s32.totalorder %s24, 1
          %s265 = scalar_select %p264, %s24, 1
          %p266 = scmp.lt.s32.totalorder %s25, 0
          %s267 = scalar_select %p266, %s25, 0
          %s268 = sadd.s32 %s267, %s265
          %s269 = smul.addr %s268, 8
          %s270 = scalar_lea.vmem %s0, %s269
        $region40: #{tpu_custom_call.1} parent=35 // pred_fallthru
          _
        // Predicated region
        $region41: #{tpu_custom_call.1} parent=35 // pred_check
          %p271 = pneg %p86
        $region42: #{tpu_custom_call.1} parent=35 // pred_check_branch
          %273 = sbr.rel (%p271) target = $region44
        $region43: #{tpu_custom_call.1} parent=35 // pred_region
          %p274 = scmp.lt.s32.totalorder %s24, 1
          %s275 = scalar_select %p274, %s24, 1
          %p276 = scmp.lt.s32.totalorder %s26, 0
          %s277 = scalar_select %p276, %s26, 0
          %s278 = sadd.s32 %s277, %s275
          %s279 = smul.addr %s278, 8
          %s280 = scalar_lea.vmem %s1, %s279
        $region44: #{tpu_custom_call.1} parent=35 // pred_fallthru
          _
      $region36: #{tpu_custom_call.1} parent=5 // pred_fallthru
        _
      %p281 = scmp.le.s32.totalorder 1, %s17
      %p282 = scmp.lt.s32.totalorder %s17, 3
      %p283 = pnand %p281, %p282
      %p284 = pneg %p283
      // Predicated region
      $region45: #{tpu_custom_call.1} parent=5 // pred_check
        _
      $region46: #{tpu_custom_call.1} parent=5 // pred_check_branch
        %286 = sbr.rel (%p283) target = $region48
      $region47: #{tpu_custom_call.1} parent=5 // pred_region
        %s287 = ssub.s32 %s17, 1
        %p288 = scmp.lt.s32.totalorder %s27, 1
        %s289 = scalar_select %p288, %s27, 1
        %p290 = scmp.lt.s32.totalorder %s28, 0
        %s291 = scalar_select %p290, %s28, 0
        %s292 = sadd.s32 %s291, %s289
        %s293 = smul.addr %s292, 8
        %s294 = scalar_lea.vmem %s0, %s293
        %p295 = pneg %p64
        %p296 = pneg %p61
        %p297 = scmp.lt.s32.totalorder %s27, 1
        %s298 = scalar_select %p297, %s27, 1
        %p299 = scmp.lt.s32.totalorder %s29, 0
        %s300 = scalar_select %p299, %s29, 0
        %s301 = sadd.s32 %s300, %s298
        %s302 = smul.addr %s301, 8
        %s303 = scalar_lea.vmem %s1, %s302
        %p304 = pneg %p92
        %p305 = pneg %p89
        %p306 = pneg %p113
        %p307 = pneg %p110
        %p308 = pneg %p134
        %p309 = pneg %p131
        %p310 = pneg %p155
        %p311 = pneg %p152
        %p312 = pneg %p176
        %p313 = pneg %p173
        %p314 = pneg %p197
        %p315 = pneg %p194
        %p316 = pneg %p227
        %p317 = pneg %p224
        %s318 = sand.u32 %s214, 1
        %s319 = scalar_lea.sflag [#allocation5], %s318
        %s320 = sand.u32 %s214, 1
        %s321 = smul.addr %s320, 8
        %s322 = scalar_lea.vmem [#allocation4], %s321
        %p323 = scmp.lt.s32.totalorder %s27, 1
        %s324 = scalar_select %p323, %s27, 1
        %p325 = scmp.lt.s32.totalorder %s28, 0
        %s326 = scalar_select %p325, %s28, 0
        %s327 = sadd.s32 %s326, %s324
        %s328 = smul.addr %s327, 8
        %s329 = scalar_lea.vmem %s0, %s328
        %p330 = scmp.lt.s32.totalorder %s27, 1
        %s331 = scalar_select %p330, %s27, 1
        %p332 = scmp.lt.s32.totalorder %s29, 0
        %s333 = scalar_select %p332, %s29, 0
        %s334 = sadd.s32 %s333, %s331
        %s335 = smul.addr %s334, 8
        %s336 = scalar_lea.vmem %s1, %s335
        %p337 = scmp.eq.s32.totalorder %s29, 0
        // Predicated region
        $region49: #{tpu_custom_call.1} parent=47 // pred_check
          %p338 = pneg %p337
        $region50: #{tpu_custom_call.1} parent=47 // pred_check_branch
          %340 = sbr.rel (%p338) target = $region52
        $region51: #{tpu_custom_call.1} parent=47 // pred_region
          %v341 = vld [vmem:[%s329] sm:$0xff]
          %v342 = vld [vmem:[%s2] sm:$0xff]
          %v343 = vld [vmem:[%s2 + $0x8] sm:$0xff]
          %v344 = vld [vmem:[%s2 + $0x10] sm:$0xff]
          %v345 = vld [vmem:[%s2 + $0x18] sm:$0xff]
          %vm346 = vcmask 261120
          %v348 = vsel %vm346, %v341, 0
          %350 = vmatprep.subr.mxu0 0.0
          %351 = vmatpush1.msra.mxu0 %v342
          %352 = vmatprep.subr.mxu0 0.0
          %353 = vmatpush1.msra.mxu0 %v343
          %354 = vmatprep.subr.mxu0 0.0
          %355 = vmatpush1.msra.mxu0 %v344
          %356 = vmatprep.subr.mxu0 0.0
          %357 = vmatpush1.msra.mxu0 %v345
          %358 = vmatprep.subr.mxu0 0.0
          %359 = vmatpush1.msra.mxu0 0.0
          %360 = vmatprep.subr.mxu0 0.0
          %361 = vmatpush1.msra.mxu0 0.0
          %362 = vmatprep.subr.mxu0 0.0
          %363 = vmatpush1.msra.mxu0 0.0
          %364 = vmatprep.subr.mxu0 0.0
          %365 = vmatpush1.msra.mxu0 0.0
          %366 = vmatprep.subr.mxu0 0.0
          %367 = vmatpush1.msra.mxu0 0.0
          %368 = vmatprep.subr.mxu0 0.0
          %369 = vmatpush1.msra.mxu0 0.0
          %370 = vmatprep.subr.mxu0 0.0
          %371 = vmatpush1.msra.mxu0 0.0
          %372 = vmatprep.subr.mxu0 0.0
          %373 = vmatpush1.msra.mxu0 0.0
          %374 = vmatprep.subr.mxu0 0.0
          %375 = vmatpush1.msra.mxu0 0.0
          %376 = vmatprep.subr.mxu0 0.0
          %377 = vmatpush1.msra.mxu0 0.0
          %378 = vmatprep.subr.mxu0 0.0
          %379 = vmatpush1.msra.mxu0 0.0
          %380 = vmatprep.subr.mxu0 0.0
          %381 = vmatpush1.msra.mxu0 0.0
          %382 = vmatprep.subr.mxu0 0.0
          %383 = vmatpush1.msra.mxu0 0.0
          %384 = vmatprep.subr.mxu0 0.0
          %385 = vmatpush1.msra.mxu0 0.0
          %386 = vmatprep.subr.mxu0 0.0
          %387 = vmatpush1.msra.mxu0 0.0
          %388 = vmatprep.subr.mxu0 0.0
          %389 = vmatpush1.msra.mxu0 0.0
          %390 = vmatprep.subr.mxu0 0.0
          %391 = vmatpush1.msra.mxu0 0.0
          %392 = vmatprep.subr.mxu0 0.0
          %393 = vmatpush1.msra.mxu0 0.0
          %394 = vmatprep.subr.mxu0 0.0
          %395 = vmatpush1.msra.mxu0 0.0
          %396 = vmatprep.subr.mxu0 0.0
          %397 = vmatpush1.msra.mxu0 0.0
          %398 = vmatprep.subr.mxu0 0.0
          %399 = vmatpush1.msra.mxu0 0.0
          %400 = vmatprep.subr.mxu0 0.0
          %401 = vmatpush1.msra.mxu0 0.0
          %402 = vmatprep.subr.mxu0 0.0
          %403 = vmatpush1.msra.mxu0 0.0
          %404 = vmatprep.subr.mxu0 0.0
          %405 = vmatpush1.msra.mxu0 0.0
          %406 = vmatprep.subr.mxu0 0.0
          %407 = vmatpush1.msra.mxu0 0.0
          %408 = vmatprep.subr.mxu0 0.0
          %409 = vmatpush1.msra.mxu0 0.0
          %410 = vmatprep.subr.mxu0 0.0
          %411 = vmatpush1.msra.mxu0 0.0
          %412 = vmatprep.subr.mxu0 0.0
          %413 = vmatpush1.msra.mxu0 0.0
          %414 = vmatprep.mubr.f32.mxu0 0.0
          %415 = vmatmul.mubr.f32.gmra.mrb[0].mxu0 %v348
          %v416 = vpop.f32.mrb[0].mxu0
          %v417 = vadd.f32 0.0, %v416
          %v418 = vpop.f32.mrb[0].mxu0
          %419 = vdwg.mxu0
          %420 = vst [vmem:[#allocation2] sm:$0xff] %v417
        $region52: #{tpu_custom_call.1} parent=47 // pred_fallthru
          _
        %v421 = vld [vmem:[%s336] sm:$0xff]
        %v422 = vld [vmem:[%s3] sm:$0xff]
        %v423 = vld [vmem:[%s3 + $0x8] sm:$0xff]
        %v424 = vld [vmem:[%s3 + $0x10] sm:$0xff]
        %v425 = vld [vmem:[%s3 + $0x18] sm:$0xff]
        %v426 = vld [vmem:[%s4] sm:$0x1]
        %v428 = vlaneseq
        %v429 = vshrl.u32 %v428, 7
        %v430 = vsub.s32 0, %v429
        %v431 = vrot.slane %v426, %v430
        %vm433 = vcmask 261120
        %v435 = vsel %vm433, %v421, 0
        %437 = vmatprep.subr.mxu0 0.0
        %438 = vmatpush1.msra.mxu0 %v422
        %439 = vmatprep.subr.mxu0 0.0
        %440 = vmatpush1.msra.mxu0 %v423
        %441 = vmatprep.subr.mxu0 0.0
        %442 = vmatpush1.msra.mxu0 %v424
        %443 = vmatprep.subr.mxu0 0.0
        %444 = vmatpush1.msra.mxu0 %v425
        %445 = vmatprep.subr.mxu0 0.0
        %446 = vmatpush1.msra.mxu0 0.0
        %447 = vmatprep.subr.mxu0 0.0
        %448 = vmatpush1.msra.mxu0 0.0
        %449 = vmatprep.subr.mxu0 0.0
        %450 = vmatpush1.msra.mxu0 0.0
        %451 = vmatprep.subr.mxu0 0.0
        %452 = vmatpush1.msra.mxu0 0.0
        %453 = vmatprep.subr.mxu0 0.0
        %454 = vmatpush1.msra.mxu0 0.0
        %455 = vmatprep.subr.mxu0 0.0
        %456 = vmatpush1.msra.mxu0 0.0
        %457 = vmatprep.subr.mxu0 0.0
        %458 = vmatpush1.msra.mxu0 0.0
        %459 = vmatprep.subr.mxu0 0.0
        %460 = vmatpush1.msra.mxu0 0.0
        %461 = vmatprep.subr.mxu0 0.0
        %462 = vmatpush1.msra.mxu0 0.0
        %463 = vmatprep.subr.mxu0 0.0
        %464 = vmatpush1.msra.mxu0 0.0
        %465 = vmatprep.subr.mxu0 0.0
        %466 = vmatpush1.msra.mxu0 0.0
        %467 = vmatprep.subr.mxu0 0.0
        %468 = vmatpush1.msra.mxu0 0.0
        %469 = vmatprep.subr.mxu0 0.0
        %470 = vmatpush1.msra.mxu0 0.0
        %471 = vmatprep.subr.mxu0 0.0
        %472 = vmatpush1.msra.mxu0 0.0
        %473 = vmatprep.subr.mxu0 0.0
        %474 = vmatpush1.msra.mxu0 0.0
        %475 = vmatprep.subr.mxu0 0.0
        %476 = vmatpush1.msra.mxu0 0.0
        %477 = vmatprep.subr.mxu0 0.0
        %478 = vmatpush1.msra.mxu0 0.0
        %479 = vmatprep.subr.mxu0 0.0
        %480 = vmatpush1.msra.mxu0 0.0
        %481 = vmatprep.subr.mxu0 0.0
        %482 = vmatpush1.msra.mxu0 0.0
        %483 = vmatprep.subr.mxu0 0.0
        %484 = vmatpush1.msra.mxu0 0.0
        %485 = vmatprep.subr.mxu0 0.0
        %486 = vmatpush1.msra.mxu0 0.0
        %487 = vmatprep.subr.mxu0 0.0
        %488 = vmatpush1.msra.mxu0 0.0
        %489 = vmatprep.subr.mxu0 0.0
        %490 = vmatpush1.msra.mxu0 0.0
        %491 = vmatprep.subr.mxu0 0.0
        %492 = vmatpush1.msra.mxu0 0.0
        %493 = vmatprep.subr.mxu0 0.0
        %494 = vmatpush1.msra.mxu0 0.0
        %495 = vmatprep.subr.mxu0 0.0
        %496 = vmatpush1.msra.mxu0 0.0
        %497 = vmatprep.subr.mxu0 0.0
        %498 = vmatpush1.msra.mxu0 0.0
        %499 = vmatprep.subr.mxu0 0.0
        %500 = vmatpush1.msra.mxu0 0.0
        %501 = vmatprep.mubr.f32.mxu0 0.0
        %502 = vmatmul.mubr.f32.gmra.mrb[0].mxu0 %v435
        %v503 = vpop.f32.mrb[0].mxu0
        %v504 = vadd.f32 %v431, %v503
        %v505 = vpop.f32.mrb[0].mxu0
        %506 = vdwg.mxu0
        %v507 = vld [vmem:[%s5] sm:$0xff]
        %v508 = vld [vmem:[%s5 + $0x8] sm:$0xff]
        %v509 = vld [vmem:[%s5 + $0x10] sm:$0xff]
        %v510 = vld [vmem:[%s5 + $0x18] sm:$0xff]
        %v511 = vld [vmem:[%s5 + $0x20] sm:$0xff]
        %v512 = vld [vmem:[%s5 + $0x28] sm:$0xff]
        %v513 = vld [vmem:[%s5 + $0x30] sm:$0xff]
        %v514 = vld [vmem:[%s5 + $0x38] sm:$0xff]
        %v515 = vld [vmem:[%s5 + $0x40] sm:$0xff]
        %v516 = vld [vmem:[%s5 + $0x48] sm:$0xff]
        %v517 = vld [vmem:[%s5 + $0x50] sm:$0xff]
        %v518 = vld [vmem:[%s5 + $0x58] sm:$0xff]
        %v519 = vld [vmem:[%s5 + $0x60] sm:$0xff]
        %v520 = vld [vmem:[%s5 + $0x68] sm:$0xff]
        %v521 = vld [vmem:[%s5 + $0x70] sm:$0xff]
        %v522 = vld [vmem:[%s5 + $0x78] sm:$0xff]
        %s523 = sld [smem:[#allocation3]]
        %v524 = vld [vmem:[#allocation2] sm:$0xff]
        %v526 = vcombine.high %v524, %v524
        %v528 = vunpack.c.l.s4 1966171168
        %v529 = vunpack.c.0.s8 %v528
        %v530 = vlaneseq
        %v531 = vshrl.u32 %v530, 7
        %v532 = vsub.s32 %v529, %v531
        %v533 = vrot.slane %v524, %v532
        %v535 = vunpack.c.l.s4 1966171168
        %v536 = vunpack.c.0.s8 %v535
        %v537 = vlaneseq
        %v538 = vshrl.u32 %v537, 7
        %v539 = vsub.s32 %v536, %v538
        %v540 = vrot.slane %v526, %v539
        %v541 = vcombine.high %v533, %v533
        %v542 = vcombine.high %v540, %v540
        %v544 = vunpack.c.l.s4 1966171168
        %v545 = vunpack.c.0.s8 %v544
        %v546 = vlaneseq
        %v547 = vshrl.u32 %v546, 7
        %v548 = vsub.s32 %v545, %v547
        %v549 = vrot.slane %v533, %v548
        %v551 = vunpack.c.l.s4 1966171168
        %v552 = vunpack.c.0.s8 %v551
        %v553 = vlaneseq
        %v554 = vshrl.u32 %v553, 7
        %v555 = vsub.s32 %v552, %v554
        %v556 = vrot.slane %v540, %v555
        %v558 = vunpack.c.l.s4 1966171168
        %v559 = vunpack.c.0.s8 %v558
        %v560 = vlaneseq
        %v561 = vshrl.u32 %v560, 7
        %v562 = vsub.s32 %v559, %v561
        %v563 = vrot.slane %v541, %v562
        %v565 = vunpack.c.l.s4 1966171168
        %v566 = vunpack.c.0.s8 %v565
        %v567 = vlaneseq
        %v568 = vshrl.u32 %v567, 7
        %v569 = vsub.s32 %v566, %v568
        %v570 = vrot.slane %v542, %v569
        %v571 = vcombine.high %v549, %v549
        %v572 = vcombine.high %v556, %v556
        %v573 = vcombine.high %v563, %v563
        %v574 = vcombine.high %v570, %v570
        %v575 = vlaneseq
        %v576 = vshrl.u32 %v575, 7
        %v577 = vsub.s32 0, %v576
        %v578 = vrot.slane %v549, %v577
        %v579 = vlaneseq
        %v580 = vshrl.u32 %v579, 7
        %v581 = vsub.s32 0, %v580
        %v582 = vrot.slane %v563, %v581
        %v583 = vlaneseq
        %v584 = vshrl.u32 %v583, 7
        %v585 = vsub.s32 0, %v584
        %v586 = vrot.slane %v571, %v585
        %v587 = vlaneseq
        %v588 = vshrl.u32 %v587, 7
        %v589 = vsub.s32 0, %v588
        %v590 = vrot.slane %v573, %v589
        %v591 = vlaneseq
        %v592 = vshrl.u32 %v591, 7
        %v593 = vsub.s32 0, %v592
        %v594 = vrot.slane %v556, %v593
        %v595 = vlaneseq
        %v596 = vshrl.u32 %v595, 7
        %v597 = vsub.s32 0, %v596
        %v598 = vrot.slane %v570, %v597
        %v599 = vlaneseq
        %v600 = vshrl.u32 %v599, 7
        %v601 = vsub.s32 0, %v600
        %v602 = vrot.slane %v572, %v601
        %v603 = vlaneseq
        %v604 = vshrl.u32 %v603, 7
        %v605 = vsub.s32 0, %v604
        %v606 = vrot.slane %v574, %v605
        %v615 = vadd.f32 %v578, %v504
        %v616 = vadd.f32 %v582, %v504
        %v617 = vadd.f32 %v586, %v504
        %v618 = vadd.f32 %v590, %v504
        %v619 = vadd.f32 %v594, %v504
        %v620 = vadd.f32 %v598, %v504
        %v621 = vadd.f32 %v602, %v504
        %v622 = vadd.f32 %v606, %v504
        %v623 = vtanh.pop %v615
        %v624 = vtanh.pop %v616
        %v625 = vtanh.pop %v617
        %v626 = vtanh.pop %v618
        %v627 = vtanh.pop %v619
        %v628 = vtanh.pop %v620
        %v629 = vtanh.pop %v621
        %v630 = vtanh.pop %v622
        %631 = vmatprep.subr.mxu0 0.0
        %632 = vmatpush1.msra.mxu0 %v507
        %633 = vmatprep.subr.mxu0 0.0
        %634 = vmatpush1.msra.mxu0 %v508
        %635 = vmatprep.subr.mxu0 0.0
        %636 = vmatpush1.msra.mxu0 %v509
        %637 = vmatprep.subr.mxu0 0.0
        %638 = vmatpush1.msra.mxu0 %v510
        %639 = vmatprep.subr.mxu0 0.0
        %640 = vmatpush1.msra.mxu0 %v511
        %641 = vmatprep.subr.mxu0 0.0
        %642 = vmatpush1.msra.mxu0 %v512
        %643 = vmatprep.subr.mxu0 0.0
        %644 = vmatpush1.msra.mxu0 %v513
        %645 = vmatprep.subr.mxu0 0.0
        %646 = vmatpush1.msra.mxu0 %v514
        %647 = vmatprep.subr.mxu0 0.0
        %648 = vmatpush1.msra.mxu0 %v515
        %649 = vmatprep.subr.mxu0 0.0
        %650 = vmatpush1.msra.mxu0 %v516
        %651 = vmatprep.subr.mxu0 0.0
        %652 = vmatpush1.msra.mxu0 %v517
        %653 = vmatprep.subr.mxu0 0.0
        %654 = vmatpush1.msra.mxu0 %v518
        %655 = vmatprep.subr.mxu0 0.0
        %656 = vmatpush1.msra.mxu0 %v519
        %657 = vmatprep.subr.mxu0 0.0
        %658 = vmatpush1.msra.mxu0 %v520
        %659 = vmatprep.subr.mxu0 0.0
        %660 = vmatpush1.msra.mxu0 %v521
        %661 = vmatprep.subr.mxu0 0.0
        %662 = vmatpush1.msra.mxu0 %v522
        %663 = vmatprep.subr.mxu0 0.0
        %664 = vmatpush1.msra.mxu0 0.0
        %665 = vmatprep.subr.mxu0 0.0
        %666 = vmatpush1.msra.mxu0 0.0
        %667 = vmatprep.subr.mxu0 0.0
        %668 = vmatpush1.msra.mxu0 0.0
        %669 = vmatprep.subr.mxu0 0.0
        %670 = vmatpush1.msra.mxu0 0.0
        %671 = vmatprep.subr.mxu0 0.0
        %672 = vmatpush1.msra.mxu0 0.0
        %673 = vmatprep.subr.mxu0 0.0
        %674 = vmatpush1.msra.mxu0 0.0
        %675 = vmatprep.subr.mxu0 0.0
        %676 = vmatpush1.msra.mxu0 0.0
        %677 = vmatprep.subr.mxu0 0.0
        %678 = vmatpush1.msra.mxu0 0.0
        %679 = vmatprep.subr.mxu0 0.0
        %680 = vmatpush1.msra.mxu0 0.0
        %681 = vmatprep.subr.mxu0 0.0
        %682 = vmatpush1.msra.mxu0 0.0
        %683 = vmatprep.subr.mxu0 0.0
        %684 = vmatpush1.msra.mxu0 0.0
        %685 = vmatprep.subr.mxu0 0.0
        %686 = vmatpush1.msra.mxu0 0.0
        %687 = vmatprep.subr.mxu0 0.0
        %688 = vmatpush1.msra.mxu0 0.0
        %689 = vmatprep.subr.mxu0 0.0
        %690 = vmatpush1.msra.mxu0 0.0
        %691 = vmatprep.subr.mxu0 0.0
        %692 = vmatpush1.msra.mxu0 0.0
        %693 = vmatprep.subr.mxu0 0.0
        %694 = vmatpush1.msra.mxu0 0.0
        %695 = vmatprep.mubr.f32.mxu0 0.0
        %696 = vmatmul.mubr.f32.gmra.mrb[0].mxu0 %v623
        %v697 = vpop.f32.mrb[0].mxu0
        %v698 = vadd.f32 0.0, %v697
        %v699 = vpop.f32.mrb[0].mxu0
        %700 = vmatprep.mubr.f32.mxu0 0.0
        %701 = vmatmul.mubr.f32.gmra.mrb[0].mxu0 %v624
        %v702 = vpop.f32.mrb[0].mxu0
        %v703 = vadd.f32 0.0, %v702
        %v704 = vpop.f32.mrb[0].mxu0
        %705 = vmatprep.mubr.f32.mxu0 0.0
        %706 = vmatmul.mubr.f32.gmra.mrb[0].mxu0 %v625
        %v707 = vpop.f32.mrb[0].mxu0
        %v708 = vadd.f32 0.0, %v707
        %v709 = vpop.f32.mrb[0].mxu0
        %710 = vmatprep.mubr.f32.mxu0 0.0
        %711 = vmatmul.mubr.f32.gmra.mrb[0].mxu0 %v626
        %v712 = vpop.f32.mrb[0].mxu0
        %v713 = vadd.f32 0.0, %v712
        %v714 = vpop.f32.mrb[0].mxu0
        %715 = vmatprep.mubr.f32.mxu0 0.0
        %716 = vmatmul.mubr.f32.gmra.mrb[0].mxu0 %v627
        %v717 = vpop.f32.mrb[0].mxu0
        %v718 = vadd.f32 0.0, %v717
        %v719 = vpop.f32.mrb[0].mxu0
        %720 = vmatprep.mubr.f32.mxu0 0.0
        %721 = vmatmul.mubr.f32.gmra.mrb[0].mxu0 %v628
        %v722 = vpop.f32.mrb[0].mxu0
        %v723 = vadd.f32 0.0, %v722
        %v724 = vpop.f32.mrb[0].mxu0
        %725 = vmatprep.mubr.f32.mxu0 0.0
        %726 = vmatmul.mubr.f32.gmra.mrb[0].mxu0 %v629
        %v727 = vpop.f32.mrb[0].mxu0
        %v728 = vadd.f32 0.0, %v727
        %v729 = vpop.f32.mrb[0].mxu0
        %730 = vmatprep.mubr.f32.mxu0 0.0
        %731 = vmatmul.mubr.f32.gmra.mrb[0].mxu0 %v630
        %v732 = vpop.f32.mrb[0].mxu0
        %v733 = vadd.f32 0.0, %v732
        %v734 = vpop.f32.mrb[0].mxu0
        %735 = vdwg.mxu0
        %v736 = vstv %s523
        %v737 = vadd.f32 %v698, %v736
        %v738 = vadd.f32 %v703, %v736
        %v739 = vadd.f32 %v708, %v736
        %v740 = vadd.f32 %v713, %v736
        %v741 = vadd.f32 %v718, %v736
        %v742 = vadd.f32 %v723, %v736
        %v743 = vadd.f32 %v728, %v736
        %v744 = vadd.f32 %v733, %v736
        %v745 = vtanh.pop %v737
        %v746 = vtanh.pop %v738
        %v747 = vtanh.pop %v739
        %v748 = vtanh.pop %v740
        %v749 = vtanh.pop %v741
        %v750 = vtanh.pop %v742
        %v751 = vtanh.pop %v743
        %v752 = vtanh.pop %v744
        %761 = vset.pattern.permute.xlu0 0
        %762 = vperm.xlu0 %761, %v745
        %v763 = vpop.permute.xlu0 %762
        %764 = vset.pattern.permute.xlu0 0
        %765 = vperm.xlu0 %764, %v746
        %v766 = vpop.permute.xlu0 %765
        %767 = vset.pattern.permute.xlu0 0
        %768 = vperm.xlu0 %767, %v747
        %v769 = vpop.permute.xlu0 %768
        %770 = vset.pattern.permute.xlu0 0
        %771 = vperm.xlu0 %770, %v748
        %v772 = vpop.permute.xlu0 %771
        %773 = vset.pattern.permute.xlu0 0
        %774 = vperm.xlu0 %773, %v749
        %v775 = vpop.permute.xlu0 %774
        %776 = vset.pattern.permute.xlu0 0
        %777 = vperm.xlu0 %776, %v750
        %v778 = vpop.permute.xlu0 %777
        %779 = vset.pattern.permute.xlu0 0
        %780 = vperm.xlu0 %779, %v751
        %v781 = vpop.permute.xlu0 %780
        %782 = vset.pattern.permute.xlu0 0
        %783 = vperm.xlu0 %782, %v752
        %v784 = vpop.permute.xlu0 %783
        %v785 = vlaneseq
        %v786 = vand.u32 %v785, 127
        %v787 = vlaneseq
        %v788 = vshrl.u32 %v787, 7
        %v789 = vsub.s32 %v786, %v788
        %v790 = vrot.slane %v763, %v789
        %v791 = vlaneseq
        %v792 = vshrl.u32 %v791, 7
        %v793 = vsub.s32 %v786, %v792
        %v794 = vrot.slane %v766, %v793
        %v795 = vlaneseq
        %v796 = vshrl.u32 %v795, 7
        %v797 = vsub.s32 %v786, %v796
        %v798 = vrot.slane %v769, %v797
        %v799 = vlaneseq
        %v800 = vshrl.u32 %v799, 7
        %v801 = vsub.s32 %v786, %v800
        %v802 = vrot.slane %v772, %v801
        %v803 = vlaneseq
        %v804 = vshrl.u32 %v803, 7
        %v805 = vsub.s32 %v786, %v804
        %v806 = vrot.slane %v775, %v805
        %v807 = vlaneseq
        %v808 = vshrl.u32 %v807, 7
        %v809 = vsub.s32 %v786, %v808
        %v810 = vrot.slane %v778, %v809
        %v811 = vlaneseq
        %v812 = vshrl.u32 %v811, 7
        %v813 = vsub.s32 %v786, %v812
        %v814 = vrot.slane %v781, %v813
        %v815 = vlaneseq
        %v816 = vshrl.u32 %v815, 7
        %v817 = vsub.s32 %v786, %v816
        %v818 = vrot.slane %v784, %v817
        %vm819 = vcmask 1041409
        %v820 = vsel %vm819, %v794, %v790
        %vm821 = vcmask 1042434
        %v822 = vsel %vm821, %v798, %v820
        %vm823 = vcmask 1043459
        %v824 = vsel %vm823, %v802, %v822
        %vm825 = vcmask 1044484
        %v826 = vsel %vm825, %v806, %v824
        %vm827 = vcmask 1045509
        %v828 = vsel %vm827, %v810, %v826
        %vm829 = vcmask 1046534
        %v830 = vsel %vm829, %v814, %v828
        %vm831 = vcmask 1047559
        %v832 = vsel %vm831, %v818, %v830
        %vm834 = vcmask 64512
        %835 = vst.msk [vmem:[%s322] sm:$0xff] %vm834, %v832
        %s836 = sand.u32 %s214, 1
        %s837 = scalar_lea.sflag [#allocation5], %s836
        %s838 = sand.u32 %s214, 1
        %s839 = smul.addr %s838, 8
        %s840 = scalar_lea.vmem [#allocation4], %s839
        // Predicated region
        $region53: #{tpu_custom_call.1} parent=47 // pred_check
          %p841 = pneg %p224
        $region54: #{tpu_custom_call.1} parent=47 // pred_check_branch
          %843 = sbr.rel (%p841) target = $region56
        $region55: #{tpu_custom_call.1} parent=47 // pred_region
          %s845 = ssub.s32 128, 128
          %846 = vsyncadd %s837, %s845
          %s847 = sadd.s32 %s29, %s28
          %s848 = sadd.s32 %s847, %s27
          %s849 = smul.addr %s848, 128
          %s850 = scalar_lea.hbm %s7, %s849
          %s852 = sshll.u32 %s840, 4
          %s853 = int_to_ptr.vmem [resolvable:$true] %s852
          %855 = dma.vmem_to_hbm [thread:$0]  %s853, 128, %s850, %s837
        $region56: #{tpu_custom_call.1} parent=47 // pred_fallthru
          _
      $region48: #{tpu_custom_call.1} parent=5 // pred_fallthru
        _
      %p856 = scmp.le.s32.totalorder 2, %s17
      // Predicated region
      $region57: #{tpu_custom_call.1} parent=5 // pred_check
        %p857 = pneg %p856
      $region58: #{tpu_custom_call.1} parent=5 // pred_check_branch
        %859 = sbr.rel (%p857) target = $region60
      $region59: #{tpu_custom_call.1} parent=5 // pred_region
        %s860 = ssub.s32 %s17, 2
        // Predicated region
        $region61: #{tpu_custom_call.1} parent=59 // pred_check
          %p861 = pneg %p230
        $region62: #{tpu_custom_call.1} parent=59 // pred_check_branch
          %863 = sbr.rel (%p861) target = $region64
        $region63: #{tpu_custom_call.1} parent=59 // pred_region
          %s864 = sand.u32 %s215, 1
          %s865 = scalar_lea.sflag [#allocation5], %s864
          %s866 = sand.u32 %s215, 1
          %s867 = smul.addr %s866, 8
          %s868 = scalar_lea.vmem [#allocation4], %s867
          %869 = dma.done %s865, 128
        $region64: #{tpu_custom_call.1} parent=59 // pred_fallthru
          _
      $region60: #{tpu_custom_call.1} parent=5 // pred_fallthru
        _
    $region6: #{tpu_custom_call.1} parent=1 // loop_footer
      %s21 = sadd.s32 1, %s17
    $region7: #{tpu_custom_call.1} parent=1 // loop_footer_branch
      %16 = sbr.rel target = $region3
    $region8: #{tpu_custom_call.1} parent=1 // loop_exit
      _
    %870 = vsyncpa [#allocation5], 1
    %s871 = scalar_lea.sflag [#allocation5], 1
    %872 = vsyncpa %s871, 1

</llo_original>
